<compile_context>
chip_gen: v7x
topology: tpu7x:2x2x1
jax: 0.10.0
libtpu: 0.0.40
codegen_flags: <defaults>
</compile_context>

<pallas_src>
import functools
import math

import jax
import jax.numpy as jnp
from jax.experimental import pallas as pl
from jax.experimental.pallas import tpu as pltpu


def _round_up(x, m):
    return ((x + m - 1) // m) * m


# --------------------------------------------------------------------------- kernels
def _proj_mask_kernel(x_ref, w_ref, b_ref, mask_ref,
                      mu_ref, lv_ref, alpha_ref,
                      *, h_out, hp, prior_mu, prior_logvar, prior_alpha):
    """One latent position (all batches) per grid step.

    step 0      : write the prior ("unknown") component.
    step j >= 1 : fused projection of encoder position j-1:
                  y = x @ [w_mu | w_lv | w_a] (+ bias), ReLU on the alpha columns,
                  padding-mask fill, write masked mu / logvar / alpha.
    """
    j = pl.program_id(0)
    bsz, h = mu_ref.shape  # squeezed block shapes: mu/lv [B,H], alpha/mask [B,1]

    @pl.when(j == 0)
    def _prior():
        mu_ref[...] = jnp.full((bsz, h), prior_mu, jnp.float32)
        lv_ref[...] = jnp.full((bsz, h), prior_logvar, jnp.float32)
        alpha_ref[...] = jnp.full((bsz, 1), prior_alpha, jnp.float32)

    @pl.when(j > 0)
    def _body():
        x = x_ref[...]                                          # [B, H_in]
        y = (jnp.dot(x, w_ref[...], preferred_element_type=jnp.float32)
             + b_ref[...])                                      # [B, Wtot]
        col = jax.lax.broadcasted_iota(jnp.int32, y.shape, 1)
        alpha_region = col >= 2 * hp
        # ReLU only on the alpha segment (pad columns are exactly 0 either way).
        y = jnp.where(alpha_region, jnp.maximum(y, 0.0), y)

        mu = y[:, :h_out]                                       # [B, H]
        lv = y[:, hp:hp + h_out]                                # [B, H]
        # alpha = relu(x @ w_a + b_a); recover the single column with a lane
        # reduction over the (zero-padded) alpha segment instead of a 1-lane slice.
        alpha = jnp.sum(jnp.where(alpha_region, y, 0.0), axis=1,
                        keepdims=True)                          # [B, 1]

        is_masked = mask_ref[...] > 0.5                         # [B, 1]
        mu_ref[...] = jnp.where(is_masked, 0.0, mu)
        lv_ref[...] = jnp.where(is_masked, 0.0, lv)
        alpha_ref[...] = jnp.where(is_masked, 0.0, alpha)


def _pi_kernel(alpha_ref, pi_ref):
    """Dirichlet eval branch: gammas = clamp(alpha,1e-8) zeroed where padded or
    alpha<=0; pi = gammas / sum_over_Nl(gammas).  alpha is already padding-masked,
    so the combined mask is simply alpha <= 0."""
    a = alpha_ref[...]                                          # [Nl, B, 1]
    gam = jnp.where(a > 0.0, jnp.maximum(a, 1e-8), 0.0)
    norm = jnp.sum(gam, axis=0, keepdims=True)                  # [1, B, 1]
    pi_ref[...] = gam * pl.reciprocal(norm, approx=True)


# --------------------------------------------------------------------------- wrapper
def nvib_forward(params, encoder_output, src_key_padding_mask, *,
                 prior_mu, prior_var, prior_alpha):
    """Eval-mode forward of the Nvib module (kappa/delta are irrelevant in eval)."""
    ns, bsz, h_in = encoder_output.shape
    h_out = params["w_mu"].shape[1]
    nl = ns + 1

    # Fused, lane-aligned weight slab: [ w_mu | 0pad | w_lv | 0pad | w_a | 0pad ].
    hp = _round_up(max(h_out, 1), 128)
    wtot = 2 * hp + 128
    w_cat = jnp.zeros((h_in, wtot), jnp.float32)
    w_cat = w_cat.at[:, :h_out].set(params["w_mu"])
    w_cat = w_cat.at[:, hp:hp + h_out].set(params["w_lv"])
    w_cat = w_cat.at[:, 2 * hp:2 * hp + 1].set(params["w_a"])
    b_cat = jnp.zeros((1, wtot), jnp.float32)
    b_cat = b_cat.at[:, :h_out].set(params["b_mu"])
    b_cat = b_cat.at[:, hp:hp + h_out].set(params["b_lv"])
    b_cat = b_cat.at[:, 2 * hp:2 * hp + 1].set(params["b_a"])

    # Padding mask with the (never-masked) prior row prepended: [Nl, B, 1] float32.
    maskf = jnp.concatenate(
        [jnp.zeros((1, bsz, 1), jnp.float32),
         jnp.transpose(src_key_padding_mask).astype(jnp.float32)[:, :, None]],
        axis=0)

    kernel = functools.partial(
        _proj_mask_kernel, h_out=h_out, hp=hp,
        prior_mu=float(prior_mu), prior_logvar=float(math.log(prior_var)),
        prior_alpha=float(prior_alpha))

    mu, logvar, alpha = pl.pallas_call(
        kernel,
        grid=(nl,),
        in_specs=[
            # encoder position j-1 (clamped for the prior step, which ignores it)
            pl.BlockSpec((None, bsz, h_in), lambda j: (jnp.maximum(j - 1, 0), 0, 0)),
            pl.BlockSpec((h_in, wtot), lambda j: (0, 0)),   # fused weights, resident
            pl.BlockSpec((1, wtot), lambda j: (0, 0)),      # fused bias, resident
            pl.BlockSpec((None, bsz, 1), lambda j: (j, 0, 0)),
        ],
        out_specs=(
            pl.BlockSpec((None, bsz, h_out), lambda j: (j, 0, 0)),
            pl.BlockSpec((None, bsz, h_out), lambda j: (j, 0, 0)),
            pl.BlockSpec((None, bsz, 1), lambda j: (j, 0, 0)),
        ),
        out_shape=(
            jax.ShapeDtypeStruct((nl, bsz, h_out), jnp.float32),
            jax.ShapeDtypeStruct((nl, bsz, h_out), jnp.float32),
            jax.ShapeDtypeStruct((nl, bsz, 1), jnp.float32),
        ),
        compiler_params=pltpu.CompilerParams(
            dimension_semantics=("parallel",)),
    )(encoder_output, w_cat, b_cat, maskf)

    # pi normalization over the latent axis — tiny, single block.
    pi = pl.pallas_call(
        _pi_kernel,
        grid=(1,),
        in_specs=[pl.BlockSpec((nl, bsz, 1), lambda i: (0, 0, 0))],
        out_specs=pl.BlockSpec((nl, bsz, 1), lambda i: (0, 0, 0)),
        out_shape=jax.ShapeDtypeStruct((nl, bsz, 1), jnp.float32),
    )(alpha)

    memory_key_padding_mask = jnp.concatenate(
        [jnp.zeros((bsz, 1), bool), src_key_padding_mask], axis=1)   # [B, Nl]

    # Summary statistics — kept as device scalars (no host sync, jit-friendly).
    a2 = alpha[..., 0]                                           # [Nl, B]
    nz = jnp.sum((a2 != 0.0).astype(jnp.float32), axis=0)        # [B]
    valid = jnp.sum(1.0 - maskf[..., 0], axis=0)                 # [B] (incl. prior row)
    avg_num_vec = jnp.mean(nz)
    avg_prop_vec = jnp.mean(nz / valid)
    avg_alpha0 = jnp.mean(jnp.sum(a2, axis=0))

    z = mu  # eval-mode reparameterize_gaussian: z == (masked) mu; share the array.
    return {
        "z": (z, pi, mu, logvar),
        "pi": pi,
        "memory_key_padding_mask": memory_key_padding_mask,
        "mu": mu,
        "logvar": logvar,
        "alpha": alpha,
        "avg_num_vec": avg_num_vec,
        "avg_prop_vec": avg_prop_vec,
        "avg_alpha0": avg_alpha0,
    }


# --------------------------------------------------------------------------- reference
def nvib_reference(params, x, src_key_padding_mask, prior_mu, prior_var, prior_alpha):
    """Pure-JAX eval-mode reference (mirrors the PyTorch module's forward)."""
    mu = jnp.einsum("sbi,io->sbo", x, params["w_mu"]) + params["b_mu"]
    logvar = jnp.einsum("sbi,io->sbo", x, params["w_lv"]) + params["b_lv"]
    alpha = jnp.maximum(jnp.einsum("sbi,io->sbo", x, params["w_a"]) + params["b_a"], 0.0)
    ns, bsz, h = mu.shape
    mu = jnp.concatenate([jnp.full((1, bsz, h), prior_mu, jnp.float32), mu], 0)
    logvar = jnp.concatenate(
        [jnp.full((1, bsz, h), math.log(prior_var), jnp.float32), logvar], 0)
    alpha = jnp.concatenate([jnp.full((1, bsz, 1), prior_alpha, jnp.float32), alpha], 0)
    mask = jnp.concatenate(
        [jnp.zeros((1, bsz, 1), bool), jnp.transpose(src_key_padding_mask)[:, :, None]], 0)
    alpha_mask = jnp.logical_or(mask, alpha <= 0.0)
    gam = jnp.where(alpha_mask, 0.0, jnp.maximum(alpha, 1e-8))
    pi = gam / jnp.sum(gam, axis=0, keepdims=True)
    return (jnp.where(mask, 0.0, mu), jnp.where(mask, 0.0, logvar),
            jnp.where(mask, 0.0, alpha), pi)


# --------------------------------------------------------------------------- main
def _init_linear(key, fan_in, fan_out):
    # Deterministic init mirroring nn.Linear default U(-1/sqrt(fan_in), 1/sqrt(fan_in)).
    kw, kb = jax.random.split(key)
    bound = 1.0 / math.sqrt(fan_in)
    w = jax.random.uniform(kw, (fan_in, fan_out), jnp.float32, -bound, bound)
    b = jax.random.uniform(kb, (1, fan_out), jnp.float32, -bound, bound)
    return w, b


if __name__ == "__main__":
    key = jax.random.PRNGKey(0)
    Ns, B, H_in, H_out = 8, 2, 32, 32
    prior_mu, prior_var, prior_alpha = 0.0, 1.0, 1.0

    k_x, k_mu, k_lv, k_a = jax.random.split(key, 4)
    encoder_output = jax.random.normal(k_x, (Ns, B, H_in), jnp.float32)

    # src_key_padding_mask [B, Ns]: True = padded. Batch 0 full length, batch 1 len=5.
    lengths = jnp.array([Ns, 5])
    src_key_padding_mask = jnp.arange(Ns)[None, :] >= lengths[:, None]

    w_mu, b_mu = _init_linear(k_mu, H_in, H_out)
    w_lv, b_lv = _init_linear(k_lv, H_in, H_out)
    w_a, b_a = _init_linear(k_a, H_in, 1)
    params = dict(w_mu=w_mu, b_mu=b_mu, w_lv=w_lv, b_lv=b_lv, w_a=w_a, b_a=b_a)

    fwd = jax.jit(functools.partial(
        nvib_forward, prior_mu=prior_mu, prior_var=prior_var, prior_alpha=prior_alpha))
    out = fwd(params, encoder_output, src_key_padding_mask)
    jax.block_until_ready(out)

    # Sanity checks against a pure-JAX reference (loose tol: MXU f32 vs XLA matmul
    # precision + approx reciprocal in the pi kernel).
    ref_mu, ref_lv, ref_a, ref_pi = nvib_reference(
        params, encoder_output, src_key_padding_mask, prior_mu, prior_var, prior_alpha)
    Nl = Ns + 1
    assert out["mu"].shape == (Nl, B, H_out)
    assert out["logvar"].shape == (Nl, B, H_out)
    assert out["alpha"].shape == (Nl, B, 1)
    assert out["pi"].shape == (Nl, B, 1)
    assert out["memory_key_padding_mask"].shape == (B, Nl)
    assert bool(jnp.allclose(out["mu"], ref_mu, atol=2e-2, rtol=2e-2))
    assert bool(jnp.allclose(out["logvar"], ref_lv, atol=2e-2, rtol=2e-2))
    assert bool(jnp.allclose(out["alpha"], ref_a, atol=2e-2, rtol=2e-2))
    assert bool(jnp.allclose(out["pi"], ref_pi, atol=2e-2, rtol=2e-2))
    pi_sums = jnp.sum(out["pi"], axis=0)[:, 0]
    assert bool(jnp.all(jnp.abs(pi_sums - 1.0) < 2e-2))

    print("KERNEL_OK")
</pallas_src>

<mosaic_0001>
module attributes {stable_mosaic.version = 11 : i64} {
  func.func @_proj_mask_kernel(%arg0: i32, %arg1: memref<1x2x32xf32, #tpu.memory_space<vmem>>, %arg2: memref<32x384xf32, #tpu.memory_space<vmem>>, %arg3: memref<1x384xf32, #tpu.memory_space<vmem>>, %arg4: memref<1x2x1xf32, #tpu.memory_space<vmem>>, %arg5: memref<1x2x32xf32, #tpu.memory_space<vmem>>, %arg6: memref<1x2x32xf32, #tpu.memory_space<vmem>>, %arg7: memref<1x2x1xf32, #tpu.memory_space<vmem>>) attributes {dimension_semantics = [#tpu.dimension_semantics<parallel>], iteration_bounds = array<i64: 9>, scalar_prefetch = 0 : i64, scratch_operands = 0 : i64, tpu.core_type = #tpu.core_type<tc>, window_params = [{transform_indices = @transform_0, window_bounds = array<i64: 1, 2, 32>}, {pipeline_mode = #tpu.pipeline_mode<synchronous>, transform_indices = @transform_1, window_bounds = array<i64: 32, 384>}, {pipeline_mode = #tpu.pipeline_mode<synchronous>, transform_indices = @transform_2, window_bounds = array<i64: 1, 384>}, {transform_indices = @transform_3, window_bounds = array<i64: 1, 2, 1>}, {transform_indices = @transform_4, window_bounds = array<i64: 1, 2, 32>}, {transform_indices = @transform_5, window_bounds = array<i64: 1, 2, 32>}, {transform_indices = @transform_6, window_bounds = array<i64: 1, 2, 1>}]} {
    %c0_i32 = arith.constant 0 : i32
    %0 = arith.cmpi eq, %arg0, %c0_i32 : i32
    %1 = arith.extui %0 : i1 to i32
    %c0_i32_0 = arith.constant 0 : i32
    %2 = arith.cmpi ne, %1, %c0_i32_0 : i32
    scf.if %2 {
      %cst = arith.constant 0.000000e+00 : f32
      %6 = vector.broadcast %cst : f32 to vector<2x32xf32>
      %c0 = arith.constant 0 : index
      %c0_3 = arith.constant 0 : index
      %c0_4 = arith.constant 0 : index
      %7 = vector.load %arg5[%c0, %c0_3, %c0_4] : memref<1x2x32xf32, #tpu.memory_space<vmem>>, vector<1x2x32xf32>
      %8 = vector.shape_cast %7 : vector<1x2x32xf32> to vector<2x32xf32>
      %9 = vector.shape_cast %6 : vector<2x32xf32> to vector<1x2x32xf32>
      tpu.vector_store %arg5[%c0, %c0_3, %c0_4], %9 {strides = array<i32>} : memref<1x2x32xf32, #tpu.memory_space<vmem>>, vector<1x2x32xf32>,
      %cst_5 = arith.constant 0.000000e+00 : f32
      %10 = vector.broadcast %cst_5 : f32 to vector<2x32xf32>
      %c0_6 = arith.constant 0 : index
      %c0_7 = arith.constant 0 : index
      %c0_8 = arith.constant 0 : index
      %11 = vector.load %arg6[%c0_6, %c0_7, %c0_8] : memref<1x2x32xf32, #tpu.memory_space<vmem>>, vector<1x2x32xf32>
      %12 = vector.shape_cast %11 : vector<1x2x32xf32> to vector<2x32xf32>
      %13 = vector.shape_cast %10 : vector<2x32xf32> to vector<1x2x32xf32>
      tpu.vector_store %arg6[%c0_6, %c0_7, %c0_8], %13 {strides = array<i32>} : memref<1x2x32xf32, #tpu.memory_space<vmem>>, vector<1x2x32xf32>,
      %cst_9 = arith.constant 1.000000e+00 : f32
      %14 = vector.broadcast %cst_9 : f32 to vector<2x1xf32>
      %c0_10 = arith.constant 0 : index
      %c0_11 = arith.constant 0 : index
      %c0_12 = arith.constant 0 : index
      %15 = vector.load %arg7[%c0_10, %c0_11, %c0_12] : memref<1x2x1xf32, #tpu.memory_space<vmem>>, vector<1x2x1xf32>
      %16 = vector.shape_cast %15 : vector<1x2x1xf32> to vector<2x1xf32>
      %17 = vector.shape_cast %14 : vector<2x1xf32> to vector<1x2x1xf32>
      tpu.vector_store %arg7[%c0_10, %c0_11, %c0_12], %17 {strides = array<i32>} : memref<1x2x1xf32, #tpu.memory_space<vmem>>, vector<1x2x1xf32>,
    } else {
    }
    %c0_i32_1 = arith.constant 0 : i32
    %3 = arith.cmpi sgt, %arg0, %c0_i32_1 : i32
    %4 = arith.extui %3 : i1 to i32
    %c0_i32_2 = arith.constant 0 : i32
    %5 = arith.cmpi ne, %4, %c0_i32_2 : i32
    scf.if %5 {
      %c0 = arith.constant 0 : index
      %c0_3 = arith.constant 0 : index
      %c0_4 = arith.constant 0 : index
      %6 = vector.load %arg1[%c0, %c0_3, %c0_4] : memref<1x2x32xf32, #tpu.memory_space<vmem>>, vector<1x2x32xf32>
      %7 = vector.shape_cast %6 : vector<1x2x32xf32> to vector<2x32xf32>
      %c0_5 = arith.constant 0 : index
      %c0_6 = arith.constant 0 : index
      %8 = vector.load %arg2[%c0_5, %c0_6] : memref<32x384xf32, #tpu.memory_space<vmem>>, vector<32x384xf32>
      %cst = arith.constant dense<0.000000e+00> : vector<2x384xf32>
      %9 = tpu.matmul %7, %8, %cst {dimension_numbers = #tpu.dot_dimension_numbers<[1], [0], [0], [1], [0, 0, 1, 1], [], []>} : vector<2x32xf32>, vector<32x384xf32>, vector<2x384xf32> -> vector<2x384xf32>
      %c0_7 = arith.constant 0 : index
      %c0_8 = arith.constant 0 : index
      %10 = vector.load %arg3[%c0_7, %c0_8] : memref<1x384xf32, #tpu.memory_space<vmem>>, vector<1x384xf32>
      %11 = vector.broadcast %10 : vector<1x384xf32> to vector<2x384xf32>
      %12 = arith.addf %9, %11 : vector<2x384xf32>
      %13 = tpu.iota {dimensions = array<i32: 1>} : vector<2x384xi32>
      %c256_i32 = arith.constant 256 : i32
      %14 = vector.broadcast %c256_i32 : i32 to vector<2x384xi32>
      %15 = arith.cmpi sge, %13, %14 : vector<2x384xi32>
      %cst_9 = arith.constant 0.000000e+00 : f32
      %16 = vector.broadcast %cst_9 : f32 to vector<2x384xf32>
      %17 = arith.maximumf %12, %16 : vector<2x384xf32>
      %18 = arith.select %15, %17, %12 : vector<2x384xi1>, vector<2x384xf32>
      %19 = vector.extract_strided_slice %18 {offsets = [0, 0], sizes = [2, 32], strides = [1, 1]} : vector<2x384xf32> to vector<2x32xf32>
      %20 = vector.extract_strided_slice %18 {offsets = [0, 128], sizes = [2, 32], strides = [1, 1]} : vector<2x384xf32> to vector<2x32xf32>
      %cst_10 = arith.constant 0.000000e+00 : f32
      %21 = vector.broadcast %cst_10 : f32 to vector<2x384xf32>
      %22 = arith.select %15, %18, %21 : vector<2x384xi1>, vector<2x384xf32>
      %cst_11 = arith.constant dense<0.000000e+00> : vector<2xf32>
      %23 = vector.multi_reduction <add>, %22, %cst_11 [1] : vector<2x384xf32> to vector<2xf32>
      %24 = vector.shape_cast %23 : vector<2xf32> to vector<2x1xf32>
      %c0_12 = arith.constant 0 : index
      %c0_13 = arith.constant 0 : index
      %c0_14 = arith.constant 0 : index
      %25 = vector.load %arg4[%c0_12, %c0_13, %c0_14] : memref<1x2x1xf32, #tpu.memory_space<vmem>>, vector<1x2x1xf32>
      %26 = vector.shape_cast %25 : vector<1x2x1xf32> to vector<2x1xf32>
      %cst_15 = arith.constant 5.000000e-01 : f32
      %27 = vector.broadcast %cst_15 : f32 to vector<2x1xf32>
      %28 = arith.cmpf ogt, %26, %27 : vector<2x1xf32>
      %cst_16 = arith.constant 0.000000e+00 : f32
      %29 = vector.shape_cast %28 : vector<2x1xi1> to vector<2x1xi1>
      %30 = vector.broadcast %29 : vector<2x1xi1> to vector<2x32xi1>
      %31 = vector.broadcast %cst_16 : f32 to vector<2x32xf32>
      %32 = arith.select %30, %31, %19 : vector<2x32xi1>, vector<2x32xf32>
      %c0_17 = arith.constant 0 : index
      %c0_18 = arith.constant 0 : index
      %c0_19 = arith.constant 0 : index
      %33 = vector.load %arg5[%c0_17, %c0_18, %c0_19] : memref<1x2x32xf32, #tpu.memory_space<vmem>>, vector<1x2x32xf32>
      %34 = vector.shape_cast %33 : vector<1x2x32xf32> to vector<2x32xf32>
      %35 = vector.shape_cast %32 : vector<2x32xf32> to vector<1x2x32xf32>
      tpu.vector_store %arg5[%c0_17, %c0_18, %c0_19], %35 {strides = array<i32>} : memref<1x2x32xf32, #tpu.memory_space<vmem>>, vector<1x2x32xf32>,
      %cst_20 = arith.constant 0.000000e+00 : f32
      %36 = vector.shape_cast %28 : vector<2x1xi1> to vector<2x1xi1>
      %37 = vector.broadcast %36 : vector<2x1xi1> to vector<2x32xi1>
      %38 = vector.broadcast %cst_20 : f32 to vector<2x32xf32>
      %39 = arith.select %37, %38, %20 : vector<2x32xi1>, vector<2x32xf32>
      %c0_21 = arith.constant 0 : index
      %c0_22 = arith.constant 0 : index
      %c0_23 = arith.constant 0 : index
      %40 = vector.load %arg6[%c0_21, %c0_22, %c0_23] : memref<1x2x32xf32, #tpu.memory_space<vmem>>, vector<1x2x32xf32>
      %41 = vector.shape_cast %40 : vector<1x2x32xf32> to vector<2x32xf32>
      %42 = vector.shape_cast %39 : vector<2x32xf32> to vector<1x2x32xf32>
      tpu.vector_store %arg6[%c0_21, %c0_22, %c0_23], %42 {strides = array<i32>} : memref<1x2x32xf32, #tpu.memory_space<vmem>>, vector<1x2x32xf32>,
      %cst_24 = arith.constant 0.000000e+00 : f32
      %43 = vector.broadcast %cst_24 : f32 to vector<2x1xf32>
      %44 = arith.select %28, %43, %24 : vector<2x1xi1>, vector<2x1xf32>
      %c0_25 = arith.constant 0 : index
      %c0_26 = arith.constant 0 : index
      %c0_27 = arith.constant 0 : index
      %45 = vector.load %arg7[%c0_25, %c0_26, %c0_27] : memref<1x2x1xf32, #tpu.memory_space<vmem>>, vector<1x2x1xf32>
      %46 = vector.shape_cast %45 : vector<1x2x1xf32> to vector<2x1xf32>
      %47 = vector.shape_cast %44 : vector<2x1xf32> to vector<1x2x1xf32>
      tpu.vector_store %arg7[%c0_25, %c0_26, %c0_27], %47 {strides = array<i32>} : memref<1x2x1xf32, #tpu.memory_space<vmem>>, vector<1x2x1xf32>,
    } else {
    }
    return
  }
  func.func @transform_0(%arg0: i32) -> (i32, i32, i32) {
    %c1_i32 = arith.constant 1 : i32
    %0 = arith.subi %arg0, %c1_i32 : i32
    %c0_i32 = arith.constant 0 : i32
    %1 = arith.maxsi %0, %c0_i32 : i32
    %c0_i32_0 = arith.constant 0 : i32
    %c0_i32_1 = arith.constant 0 : i32
    %c0_i32_2 = arith.constant 0 : i32
    return %1, %c0_i32_0, %c0_i32_1 : i32, i32, i32
  }
  func.func @transform_1(%arg0: i32) -> (i32, i32) {
    %c0_i32 = arith.constant 0 : i32
    %c0_i32_0 = arith.constant 0 : i32
    %c0_i32_1 = arith.constant 0 : i32
    return %c0_i32, %c0_i32_0 : i32, i32
  }
  func.func @transform_2(%arg0: i32) -> (i32, i32) {
    %c0_i32 = arith.constant 0 : i32
    %c0_i32_0 = arith.constant 0 : i32
    %c0_i32_1 = arith.constant 0 : i32
    return %c0_i32, %c0_i32_0 : i32, i32
  }
  func.func @transform_3(%arg0: i32) -> (i32, i32, i32) {
    %c0_i32 = arith.constant 0 : i32
    %c0_i32_0 = arith.constant 0 : i32
    %c0_i32_1 = arith.constant 0 : i32
    return %arg0, %c0_i32, %c0_i32_0 : i32, i32, i32
  }
  func.func @transform_4(%arg0: i32) -> (i32, i32, i32) {
    %c0_i32 = arith.constant 0 : i32
    %c0_i32_0 = arith.constant 0 : i32
    %c0_i32_1 = arith.constant 0 : i32
    return %arg0, %c0_i32, %c0_i32_0 : i32, i32, i32
  }
  func.func @transform_5(%arg0: i32) -> (i32, i32, i32) {
    %c0_i32 = arith.constant 0 : i32
    %c0_i32_0 = arith.constant 0 : i32
    %c0_i32_1 = arith.constant 0 : i32
    return %arg0, %c0_i32, %c0_i32_0 : i32, i32, i32
  }
  func.func @transform_6(%arg0: i32) -> (i32, i32, i32) {
    %c0_i32 = arith.constant 0 : i32
    %c0_i32_0 = arith.constant 0 : i32
    %c0_i32_1 = arith.constant 0 : i32
    return %arg0, %c0_i32, %c0_i32_0 : i32, i32, i32
  }
}

module attributes {stable_mosaic.version = 11 : i64} {
  func.func @_pi_kernel(%arg0: i32, %arg1: memref<9x2x1xf32, #tpu.memory_space<vmem>>, %arg2: memref<9x2x1xf32, #tpu.memory_space<vmem>>) attributes {dimension_semantics = [#tpu.dimension_semantics<arbitrary>], iteration_bounds = array<i64: 1>, scalar_prefetch = 0 : i64, scratch_operands = 0 : i64, tpu.core_type = #tpu.core_type<tc>, window_params = [{pipeline_mode = #tpu.pipeline_mode<synchronous>, transform_indices = @transform_0, window_bounds = array<i64: 9, 2, 1>}, {pipeline_mode = #tpu.pipeline_mode<synchronous>, transform_indices = @transform_1, window_bounds = array<i64: 9, 2, 1>}]} {
    %c0 = arith.constant 0 : index
    %c0_0 = arith.constant 0 : index
    %c0_1 = arith.constant 0 : index
    %0 = vector.load %arg1[%c0, %c0_0, %c0_1] : memref<9x2x1xf32, #tpu.memory_space<vmem>>, vector<9x2x1xf32>
    %cst = arith.constant 0.000000e+00 : f32
    %1 = vector.broadcast %cst : f32 to vector<9x2x1xf32>
    %2 = arith.cmpf ogt, %0, %1 : vector<9x2x1xf32>
    %cst_2 = arith.constant 9.99999993E-9 : f32
    %3 = vector.broadcast %cst_2 : f32 to vector<9x2x1xf32>
    %4 = arith.maximumf %0, %3 : vector<9x2x1xf32>
    %cst_3 = arith.constant 0.000000e+00 : f32
    %5 = vector.broadcast %cst_3 : f32 to vector<9x2x1xf32>
    %6 = arith.select %2, %4, %5 : vector<9x2x1xi1>, vector<9x2x1xf32>
    %cst_4 = arith.constant dense<0.000000e+00> : vector<2x1xf32>
    %7 = vector.multi_reduction <add>, %6, %cst_4 [0] : vector<9x2x1xf32> to vector<2x1xf32>
    %8 = vector.shape_cast %7 : vector<2x1xf32> to vector<1x2x1xf32>
    %9 = tpu.reciprocal %8 {approx = true} : vector<1x2x1xf32> -> vector<1x2x1xf32>
    %10 = vector.broadcast %9 : vector<1x2x1xf32> to vector<9x2x1xf32>
    %11 = arith.mulf %6, %10 : vector<9x2x1xf32>
    %c0_5 = arith.constant 0 : index
    %c0_6 = arith.constant 0 : index
    %c0_7 = arith.constant 0 : index
    %12 = vector.load %arg2[%c0_5, %c0_6, %c0_7] : memref<9x2x1xf32, #tpu.memory_space<vmem>>, vector<9x2x1xf32>
    tpu.vector_store %arg2[%c0_5, %c0_6, %c0_7], %11 {strides = array<i32>} : memref<9x2x1xf32, #tpu.memory_space<vmem>>, vector<9x2x1xf32>,
    return
  }
  func.func @transform_0(%arg0: i32) -> (i32, i32, i32) {
    %c0_i32 = arith.constant 0 : i32
    %c0_i32_0 = arith.constant 0 : i32
    %c0_i32_1 = arith.constant 0 : i32
    %c0_i32_2 = arith.constant 0 : i32
    return %c0_i32, %c0_i32_0, %c0_i32_1 : i32, i32, i32
  }
  func.func @transform_1(%arg0: i32) -> (i32, i32, i32) {
    %c0_i32 = arith.constant 0 : i32
    %c0_i32_0 = arith.constant 0 : i32
    %c0_i32_1 = arith.constant 0 : i32
    %c0_i32_2 = arith.constant 0 : i32
    return %c0_i32, %c0_i32_0, %c0_i32_1 : i32, i32, i32
  }
}

</mosaic_0001>

<llo_original>
// kernel: nvib_forward.3
$region0: #{nvib_forward.3}
  #allocation0 [shape = 'u32[]', space=smem, size = 0x4, offset = 0x4, fixed_abs, tag = 'smem constant byte address 0x4 - core index']
  #allocation1 [shape = 'u32[144,128]{1,0:T(1,128)}', space=vmem, size = 0x12000, scoped, tag = 'internal scratch']
  %s0 = inlined_call_operand.vmem [shape: f32[9,2,1], index: 0, kind: input, shape index: {}]
  %s1 = inlined_call_operand.vmem [shape: f32[9,2,1], index: 1, kind: output, shape index: {}]
  %s2 = sld [smem:[#allocation0]]
  $region14: #{nvib_forward.3} parent=0
    _
  %s4 = ssub.s32 1, %s2
  %s5 = scalar_select 0, %s4, %s2
  // Predicated region
  $region2: #{nvib_forward.3} parent=0 // pred_check
    _
  $region3: #{nvib_forward.3} parent=0 // pred_check_branch
    %7 = sbr.rel (0) target = $region5
  $region4: #{nvib_forward.3} parent=0 // pred_region
    _
  $region5: #{nvib_forward.3} parent=0 // pred_fallthru
    _
  %v8 = vld [vmem:[%s0] sm:$0x3]
  %v9 = vld [vmem:[%s0 + $0x2] sm:$0x3]
  %v10 = vld [vmem:[%s0 + $0x4] sm:$0x3]
  %v11 = vld [vmem:[%s0 + $0x6] sm:$0x3]
  %v12 = vld [vmem:[%s0 + $0x8] sm:$0x3]
  %v13 = vld [vmem:[%s0 + $0xa] sm:$0x3]
  %v14 = vld [vmem:[%s0 + $0xc] sm:$0x3]
  %v15 = vld [vmem:[%s0 + $0xe] sm:$0x3]
  %v16 = vld [vmem:[%s0 + $0x10] sm:$0x3]
  %vm17 = vcmp.gt.f32.partialorder %v8, 0.0
  %vm18 = vcmp.gt.f32.partialorder %v9, 0.0
  %vm19 = vcmp.gt.f32.partialorder %v10, 0.0
  %vm20 = vcmp.gt.f32.partialorder %v11, 0.0
  %vm21 = vcmp.gt.f32.partialorder %v12, 0.0
  %vm22 = vcmp.gt.f32.partialorder %v13, 0.0
  %vm23 = vcmp.gt.f32.partialorder %v14, 0.0
  %vm24 = vcmp.gt.f32.partialorder %v15, 0.0
  %vm25 = vcmp.gt.f32.partialorder %v16, 0.0
  %v26 = vmax.f32 %v8, 1e-08
  %v27 = vmax.f32 %v9, 1e-08
  %v28 = vmax.f32 %v10, 1e-08
  %v29 = vmax.f32 %v11, 1e-08
  %v30 = vmax.f32 %v12, 1e-08
  %v31 = vmax.f32 %v13, 1e-08
  %v32 = vmax.f32 %v14, 1e-08
  %v33 = vmax.f32 %v15, 1e-08
  %v34 = vmax.f32 %v16, 1e-08
  %v35 = vsel %vm17, %v26, 0.0
  %v36 = vsel %vm18, %v27, 0.0
  %v37 = vsel %vm19, %v28, 0.0
  %v38 = vsel %vm20, %v29, 0.0
  %v39 = vsel %vm21, %v30, 0.0
  %v40 = vsel %vm22, %v31, 0.0
  %v41 = vsel %vm23, %v32, 0.0
  %v42 = vsel %vm24, %v33, 0.0
  %v43 = vsel %vm25, %v34, 0.0
  %vm44 = vcmask 1024
  %v45 = vsel %vm44, %v35, 0.0
  %v46 = vsel %vm44, %v36, 0.0
  %v47 = vadd.f32 %v45, %v46
  %v48 = vsel %vm44, %v37, 0.0
  %v49 = vadd.f32 %v47, %v48
  %v50 = vsel %vm44, %v38, 0.0
  %v51 = vadd.f32 %v49, %v50
  %v52 = vsel %vm44, %v39, 0.0
  %v53 = vadd.f32 %v51, %v52
  %v54 = vsel %vm44, %v40, 0.0
  %v55 = vadd.f32 %v53, %v54
  %v56 = vsel %vm44, %v41, 0.0
  %v57 = vadd.f32 %v55, %v56
  %v58 = vsel %vm44, %v42, 0.0
  %v59 = vadd.f32 %v57, %v58
  %v60 = vsel %vm44, %v43, 0.0
  %v61 = vadd.f32 %v59, %v60
  %v62 = vrcp.pop %v61
  %v63 = vmul.f32 %v35, %v62
  %v64 = vmul.f32 %v36, %v62
  %v65 = vmul.f32 %v37, %v62
  %v66 = vmul.f32 %v38, %v62
  %v67 = vmul.f32 %v39, %v62
  %v68 = vmul.f32 %v40, %v62
  %v69 = vmul.f32 %v41, %v62
  %v70 = vmul.f32 %v42, %v62
  %v71 = vmul.f32 %v43, %v62
  %72 = vst.msk [vmem:[%s1] sm:$0x3] %vm44, %v63
  %73 = vst.msk [vmem:[%s1 + $0x2] sm:$0x3] %vm44, %v64
  %74 = vst.msk [vmem:[%s1 + $0x4] sm:$0x3] %vm44, %v65
  %75 = vst.msk [vmem:[%s1 + $0x6] sm:$0x3] %vm44, %v66
  %76 = vst.msk [vmem:[%s1 + $0x8] sm:$0x3] %vm44, %v67
  %77 = vst.msk [vmem:[%s1 + $0xa] sm:$0x3] %vm44, %v68
  %78 = vst.msk [vmem:[%s1 + $0xc] sm:$0x3] %vm44, %v69
  %79 = vst.msk [vmem:[%s1 + $0xe] sm:$0x3] %vm44, %v70
  %80 = vst.msk [vmem:[%s1 + $0x10] sm:$0x3] %vm44, %v71
  // Predicated region
  $region6: #{nvib_forward.3} parent=0 // pred_check
    _
  $region7: #{nvib_forward.3} parent=0 // pred_check_branch
    %82 = sbr.rel (0) target = $region9
  $region8: #{nvib_forward.3} parent=0 // pred_region
    _
  $region9: #{nvib_forward.3} parent=0 // pred_fallthru
    _
  // Predicated region
  $region10: #{nvib_forward.3} parent=0 // pred_check
    _
  $region11: #{nvib_forward.3} parent=0 // pred_check_branch
    %84 = sbr.rel (0) target = $region13
  $region12: #{nvib_forward.3} parent=0 // pred_region
    _
  $region13: #{nvib_forward.3} parent=0 // pred_fallthru
    _

// kernel: nvib_forward.2
$region0: #{nvib_forward.2}
  #allocation0 [shape = 'u32[]', space=smem, size = 0x4, offset = 0x4, fixed_abs, tag = 'smem constant byte address 0x4 - core index']
  #allocation1 [shape = 'u32[144,128]{1,0:T(1,128)}', space=vmem, size = 0x12000, scoped, tag = 'internal scratch']
  %s0 = inlined_call_operand.vmem [shape: f32[8,2,32], index: 0, kind: input, shape index: {}]
  %s1 = inlined_call_operand.vmem [shape: f32[32,384], index: 1, kind: input, shape index: {}]
  %s2 = inlined_call_operand.vmem [shape: f32[1,384], index: 2, kind: input, shape index: {}]
  %s3 = inlined_call_operand.vmem [shape: f32[9,2,1], index: 3, kind: input, shape index: {}]
  %s4 = inlined_call_operand.vmem [shape: f32[9,2,32], index: 4, kind: output, shape index: {0}]
  %s5 = inlined_call_operand.vmem [shape: f32[9,2,32], index: 5, kind: output, shape index: {1}]
  %s6 = inlined_call_operand.vmem [shape: f32[9,2,1], index: 6, kind: output, shape index: {2}]
  %7 = xla_tuple %s4, %s5, %s6
  %s8 = sld [smem:[#allocation0]]
  $region73: #{nvib_forward.2} parent=0
    _
  %s10 = ssub.s32 1, %s8
  %s11 = scalar_select 0, %s10, %s8
  loop: start=0, step=1, limit=11
  $region2: #{nvib_forward.2} parent=0 // loop_pre_header
    _
  $region3: #{nvib_forward.2} parent=0 // loop_header
    %s13 = sphi 0, %s17
    %p14 = scmp.ge.s32.totalorder %s13, 11
    %s29 = sphi 0, %s31
    %s32 = sphi 0, %s29
    %s33 = sphi 0, %s32
    %s49 = sphi 0, %s33
    %s53 = sphi 0, %s53
    %s55 = sphi 0, %s53
    %s56 = sphi 0, %s55
    %s70 = sphi 0, %s56
    %s74 = sphi 0, %s74
    %s76 = sphi 0, %s74
    %s77 = sphi 0, %s76
    %s91 = sphi 0, %s77
    %s97 = sphi 0, %s99
    %s100 = sphi 0, %s97
    %s101 = sphi 0, %s100
    %s117 = sphi 0, %s101
    %s123 = sphi 0, %s125
    %s126 = sphi 0, %s123
    %s127 = sphi 0, %s126
    %s143 = sphi 0, %s127
    %s149 = sphi 0, %s151
    %s152 = sphi 0, %s149
    %s153 = sphi 0, %s152
    %s169 = sphi 0, %s153
    %s175 = sphi 0, %s177
    %s178 = sphi 0, %s175
    %s179 = sphi 0, %s178
    %s195 = sphi 0, %s179
  $region4: #{nvib_forward.2} parent=0 // loop_header_branch
    %16 = sbr.rel (%p14) target = $region8
  $region5: #{nvib_forward.2} parent=0 // loop_body
    %s18 = ssub.s32 %s13, 1
    %s19 = ssub.s32 %s13, 2
    %s20 = sadd.s32 %s13, 1
    %s21 = ssub.s32 %s13, 1
    %p22 = scmp.gt.s32.totalorder %s21, 0
    %s23 = scalar_select %p22, %s21, 0
    %s24 = ssub.s32 %s20, 1
    %p25 = scmp.gt.s32.totalorder %s24, 0
    %s26 = scalar_select %p25, %s24, 0
    %s27 = ssub.s32 %s23, %s26
    %p28 = scmp.eq.s32.totalorder %s27, 0
    %s30 = sadd.s32 %s29, 1
    %s31 = scalar_select %p28, %s29, %s30
    %p34 = pneg %p28
    %p35 = scmp.eq.s32.totalorder %s13, 8
    %p36 = por %p34, %p35
    %p37 = scmp.ne.s32.totalorder %s29, %s32
    %p38 = scmp.eq.s32.totalorder %s13, 0
    %p39 = por %p37, %p38
    %p40 = scmp.ne.s32.totalorder %s29, %s32
    %p41 = scmp.eq.s32.totalorder %s18, 8
    %p42 = por %p40, %p41
    %p43 = scmp.ne.s32.totalorder %s32, %s33
    %p44 = scmp.eq.s32.totalorder %s18, 0
    %p45 = por %p43, %p44
    %p46 = scmp.ne.s32.totalorder %s32, %s33
    %p47 = scmp.eq.s32.totalorder %s19, 8
    %p48 = por %p46, %p47
    %p50 = scmp.ne.s32.totalorder %s33, %s49
    %p51 = scmp.eq.s32.totalorder %s19, 0
    %p52 = por %p50, %p51
    %s54 = sadd.s32 %s53, 1
    %p57 = scmp.eq.s32.totalorder %s13, 8
    %p58 = scmp.ne.s32.totalorder %s53, %s55
    %p59 = scmp.eq.s32.totalorder %s13, 0
    %p60 = por %p58, %p59
    %p61 = scmp.ne.s32.totalorder %s53, %s55
    %p62 = scmp.eq.s32.totalorder %s18, 8
    %p63 = por %p61, %p62
    %p64 = scmp.ne.s32.totalorder %s55, %s56
    %p65 = scmp.eq.s32.totalorder %s18, 0
    %p66 = por %p64, %p65
    %p67 = scmp.ne.s32.totalorder %s55, %s56
    %p68 = scmp.eq.s32.totalorder %s19, 8
    %p69 = por %p67, %p68
    %p71 = scmp.ne.s32.totalorder %s56, %s70
    %p72 = scmp.eq.s32.totalorder %s19, 0
    %p73 = por %p71, %p72
    %s75 = sadd.s32 %s74, 1
    %p78 = scmp.eq.s32.totalorder %s13, 8
    %p79 = scmp.ne.s32.totalorder %s74, %s76
    %p80 = scmp.eq.s32.totalorder %s13, 0
    %p81 = por %p79, %p80
    %p82 = scmp.ne.s32.totalorder %s74, %s76
    %p83 = scmp.eq.s32.totalorder %s18, 8
    %p84 = por %p82, %p83
    %p85 = scmp.ne.s32.totalorder %s76, %s77
    %p86 = scmp.eq.s32.totalorder %s18, 0
    %p87 = por %p85, %p86
    %p88 = scmp.ne.s32.totalorder %s76, %s77
    %p89 = scmp.eq.s32.totalorder %s19, 8
    %p90 = por %p88, %p89
    %p92 = scmp.ne.s32.totalorder %s77, %s91
    %p93 = scmp.eq.s32.totalorder %s19, 0
    %p94 = por %p92, %p93
    %s95 = ssub.s32 %s13, %s20
    %p96 = scmp.eq.s32.totalorder %s95, 0
    %s98 = sadd.s32 %s97, 1
    %s99 = scalar_select %p96, %s97, %s98
    %p102 = pneg %p96
    %p103 = scmp.eq.s32.totalorder %s13, 8
    %p104 = por %p102, %p103
    %p105 = scmp.ne.s32.totalorder %s97, %s100
    %p106 = scmp.eq.s32.totalorder %s13, 0
    %p107 = por %p105, %p106
    %p108 = scmp.ne.s32.totalorder %s97, %s100
    %p109 = scmp.eq.s32.totalorder %s18, 8
    %p110 = por %p108, %p109
    %p111 = scmp.ne.s32.totalorder %s100, %s101
    %p112 = scmp.eq.s32.totalorder %s18, 0
    %p113 = por %p111, %p112
    %p114 = scmp.ne.s32.totalorder %s100, %s101
    %p115 = scmp.eq.s32.totalorder %s19, 8
    %p116 = por %p114, %p115
    %p118 = scmp.ne.s32.totalorder %s101, %s117
    %p119 = scmp.eq.s32.totalorder %s19, 0
    %p120 = por %p118, %p119
    %s121 = ssub.s32 %s13, %s20
    %p122 = scmp.eq.s32.totalorder %s121, 0
    %s124 = sadd.s32 %s123, 1
    %s125 = scalar_select %p122, %s123, %s124
    %p128 = pneg %p122
    %p129 = scmp.eq.s32.totalorder %s13, 8
    %p130 = por %p128, %p129
    %p131 = scmp.ne.s32.totalorder %s123, %s126
    %p132 = scmp.eq.s32.totalorder %s13, 0
    %p133 = por %p131, %p132
    %p134 = scmp.ne.s32.totalorder %s123, %s126
    %p135 = scmp.eq.s32.totalorder %s18, 8
    %p136 = por %p134, %p135
    %p137 = scmp.ne.s32.totalorder %s126, %s127
    %p138 = scmp.eq.s32.totalorder %s18, 0
    %p139 = por %p137, %p138
    %p140 = scmp.ne.s32.totalorder %s126, %s127
    %p141 = scmp.eq.s32.totalorder %s19, 8
    %p142 = por %p140, %p141
    %p144 = scmp.ne.s32.totalorder %s127, %s143
    %p145 = scmp.eq.s32.totalorder %s19, 0
    %p146 = por %p144, %p145
    %s147 = ssub.s32 %s13, %s20
    %p148 = scmp.eq.s32.totalorder %s147, 0
    %s150 = sadd.s32 %s149, 1
    %s151 = scalar_select %p148, %s149, %s150
    %p154 = pneg %p148
    %p155 = scmp.eq.s32.totalorder %s13, 8
    %p156 = por %p154, %p155
    %p157 = scmp.ne.s32.totalorder %s149, %s152
    %p158 = scmp.eq.s32.totalorder %s13, 0
    %p159 = por %p157, %p158
    %p160 = scmp.ne.s32.totalorder %s149, %s152
    %p161 = scmp.eq.s32.totalorder %s18, 8
    %p162 = por %p160, %p161
    %p163 = scmp.ne.s32.totalorder %s152, %s153
    %p164 = scmp.eq.s32.totalorder %s18, 0
    %p165 = por %p163, %p164
    %p166 = scmp.ne.s32.totalorder %s152, %s153
    %p167 = scmp.eq.s32.totalorder %s19, 8
    %p168 = por %p166, %p167
    %p170 = scmp.ne.s32.totalorder %s153, %s169
    %p171 = scmp.eq.s32.totalorder %s19, 0
    %p172 = por %p170, %p171
    %s173 = ssub.s32 %s13, %s20
    %p174 = scmp.eq.s32.totalorder %s173, 0
    %s176 = sadd.s32 %s175, 1
    %s177 = scalar_select %p174, %s175, %s176
    %p180 = pneg %p174
    %p181 = scmp.eq.s32.totalorder %s13, 8
    %p182 = por %p180, %p181
    %p183 = scmp.ne.s32.totalorder %s175, %s178
    %p184 = scmp.eq.s32.totalorder %s13, 0
    %p185 = por %p183, %p184
    %p186 = scmp.ne.s32.totalorder %s175, %s178
    %p187 = scmp.eq.s32.totalorder %s18, 8
    %p188 = por %p186, %p187
    %p189 = scmp.ne.s32.totalorder %s178, %s179
    %p190 = scmp.eq.s32.totalorder %s18, 0
    %p191 = por %p189, %p190
    %p192 = scmp.ne.s32.totalorder %s178, %s179
    %p193 = scmp.eq.s32.totalorder %s19, 8
    %p194 = por %p192, %p193
    %p196 = scmp.ne.s32.totalorder %s179, %s195
    %p197 = scmp.eq.s32.totalorder %s19, 0
    %p198 = por %p196, %p197
    %p199 = scmp.le.s32.totalorder 1, %s13
    %p200 = scmp.lt.s32.totalorder %s13, 10
    %p201 = pnand %p199, %p200
    %p202 = pneg %p201
    // Predicated region
    $region9: #{nvib_forward.2} parent=5 // pred_check
      _
    $region10: #{nvib_forward.2} parent=5 // pred_check_branch
      %204 = sbr.rel (%p201) target = $region12
    $region11: #{nvib_forward.2} parent=5 // pred_region
      %s205 = ssub.s32 %s13, 1
      // Predicated region
      $region13: #{nvib_forward.2} parent=11 // pred_check
        %p206 = pneg %p66
      $region14: #{nvib_forward.2} parent=11 // pred_check_branch
        %208 = sbr.rel (%p206) target = $region16
      $region15: #{nvib_forward.2} parent=11 // pred_region
        _
      $region16: #{nvib_forward.2} parent=11 // pred_fallthru
        _
      // Predicated region
      $region17: #{nvib_forward.2} parent=11 // pred_check
        %p209 = pneg %p87
      $region18: #{nvib_forward.2} parent=11 // pred_check_branch
        %211 = sbr.rel (%p209) target = $region20
      $region19: #{nvib_forward.2} parent=11 // pred_region
        _
      $region20: #{nvib_forward.2} parent=11 // pred_fallthru
        _
    $region12: #{nvib_forward.2} parent=5 // pred_fallthru
      _
    %p212 = scmp.lt.s32.totalorder %s13, 9
    // Predicated region
    $region21: #{nvib_forward.2} parent=5 // pred_check
      %p213 = pneg %p212
    $region22: #{nvib_forward.2} parent=5 // pred_check_branch
      %215 = sbr.rel (%p213) target = $region24
    $region23: #{nvib_forward.2} parent=5 // pred_region
      // Predicated region
      $region25: #{nvib_forward.2} parent=23 // pred_check
        %p216 = pneg %p39
      $region26: #{nvib_forward.2} parent=23 // pred_check_branch
        %218 = sbr.rel (%p216) target = $region28
      $region27: #{nvib_forward.2} parent=23 // pred_region
        %s219 = ssub.s32 %s13, 1
        %p220 = scmp.gt.s32.totalorder %s219, 0
        %s221 = scalar_select %p220, %s219, 0
        %p222 = scmp.lt.s32.totalorder %s221, 7
        %s223 = scalar_select %p222, %s221, 7
        %s224 = smul.addr %s223, 2
        %s225 = scalar_lea.vmem %s0, %s224
        %s226 = ssub.s32 %s13, 1
        %p227 = scmp.gt.s32.totalorder %s226, 0
        %s228 = scalar_select %p227, %s226, 0
      $region28: #{nvib_forward.2} parent=23 // pred_fallthru
        _
      // Predicated region
      $region29: #{nvib_forward.2} parent=23 // pred_check
        %p229 = pneg %p107
      $region30: #{nvib_forward.2} parent=23 // pred_check_branch
        %231 = sbr.rel (%p229) target = $region32
      $region31: #{nvib_forward.2} parent=23 // pred_region
        %p232 = scmp.lt.s32.totalorder %s13, 8
        %s233 = scalar_select %p232, %s13, 8
        %s234 = smul.addr %s233, 2
        %s235 = scalar_lea.vmem %s3, %s234
      $region32: #{nvib_forward.2} parent=23 // pred_fallthru
        _
    $region24: #{nvib_forward.2} parent=5 // pred_fallthru
      _
    %p236 = scmp.le.s32.totalorder 1, %s13
    %p237 = scmp.lt.s32.totalorder %s13, 10
    %p238 = pnand %p236, %p237
    %p239 = pneg %p238
    // Predicated region
    $region33: #{nvib_forward.2} parent=5 // pred_check
      _
    $region34: #{nvib_forward.2} parent=5 // pred_check_branch
      %241 = sbr.rel (%p238) target = $region36
    $region35: #{nvib_forward.2} parent=5 // pred_region
      %s242 = ssub.s32 %s13, 1
      %s243 = ssub.s32 %s18, 1
      %p244 = scmp.gt.s32.totalorder %s243, 0
      %s245 = scalar_select %p244, %s243, 0
      %p246 = scmp.lt.s32.totalorder %s245, 7
      %s247 = scalar_select %p246, %s245, 7
      %s248 = smul.addr %s247, 2
      %s249 = scalar_lea.vmem %s0, %s248
      %p250 = pneg %p45
      %p251 = pneg %p42
      %p252 = pneg %p66
      %p253 = pneg %p63
      %p254 = pneg %p87
      %p255 = pneg %p84
      %p256 = scmp.lt.s32.totalorder %s18, 8
      %s257 = scalar_select %p256, %s18, 8
      %s258 = smul.addr %s257, 2
      %s259 = scalar_lea.vmem %s3, %s258
      %p260 = pneg %p113
      %p261 = pneg %p110
      %p262 = pneg %p139
      %p263 = pneg %p136
      %p264 = scmp.lt.s32.totalorder %s18, 8
      %s265 = scalar_select %p264, %s18, 8
      %s266 = smul.addr %s265, 2
      %s267 = scalar_lea.vmem %s4, %s266
      %p268 = pneg %p165
      %p269 = pneg %p162
      %p270 = scmp.lt.s32.totalorder %s18, 8
      %s271 = scalar_select %p270, %s18, 8
      %s272 = smul.addr %s271, 2
      %s273 = scalar_lea.vmem %s5, %s272
      %p274 = pneg %p191
      %p275 = pneg %p188
      %p276 = scmp.lt.s32.totalorder %s18, 8
      %s277 = scalar_select %p276, %s18, 8
      %s278 = smul.addr %s277, 2
      %s279 = scalar_lea.vmem %s6, %s278
      %s280 = ssub.s32 %s18, 1
      %p281 = scmp.gt.s32.totalorder %s280, 0
      %s282 = scalar_select %p281, %s280, 0
      %p283 = scmp.lt.s32.totalorder %s282, 7
      %s284 = scalar_select %p283, %s282, 7
      %s285 = smul.addr %s284, 2
      %s286 = scalar_lea.vmem %s0, %s285
      %s287 = ssub.s32 %s18, 1
      %p288 = scmp.gt.s32.totalorder %s287, 0
      %s289 = scalar_select %p288, %s287, 0
      %p290 = scmp.lt.s32.totalorder %s18, 8
      %s291 = scalar_select %p290, %s18, 8
      %s292 = smul.addr %s291, 2
      %s293 = scalar_lea.vmem %s3, %s292
      %p294 = scmp.lt.s32.totalorder %s18, 8
      %s295 = scalar_select %p294, %s18, 8
      %s296 = smul.addr %s295, 2
      %s297 = scalar_lea.vmem %s4, %s296
      %p298 = scmp.lt.s32.totalorder %s18, 8
      %s299 = scalar_select %p298, %s18, 8
      %s300 = smul.addr %s299, 2
      %s301 = scalar_lea.vmem %s5, %s300
      %p302 = scmp.lt.s32.totalorder %s18, 8
      %s303 = scalar_select %p302, %s18, 8
      %s304 = smul.addr %s303, 2
      %s305 = scalar_lea.vmem %s6, %s304
      %p306 = scmp.eq.s32.totalorder %s18, 0
      // Predicated region
      $region37: #{nvib_forward.2} parent=35 // pred_check
        %p307 = pneg %p306
      $region38: #{nvib_forward.2} parent=35 // pred_check_branch
        %309 = sbr.rel (%p307) target = $region40
      $region39: #{nvib_forward.2} parent=35 // pred_region
        %vm310 = vcmask 254976
        %311 = vst.msk [vmem:[%s297] sm:$0x3] %vm310, 0.0
        %312 = vst.msk [vmem:[%s301] sm:$0x3] %vm310, 0.0
        %vm313 = vcmask 1024
        %314 = vst.msk [vmem:[%s305] sm:$0x3] %vm313, 1.0
      $region40: #{nvib_forward.2} parent=35 // pred_fallthru
        _
      %p315 = scmp.gt.s32.totalorder %s18, 0
      // Predicated region
      $region41: #{nvib_forward.2} parent=35 // pred_check
        %p316 = pneg %p315
      $region42: #{nvib_forward.2} parent=35 // pred_check_branch
        %318 = sbr.rel (%p316) target = $region44
      $region43: #{nvib_forward.2} parent=35 // pred_region
        %v319 = vld [vmem:[%s286] sm:$0x3]
        %v320 = vld [vmem:[%s1] sm:$0xff]
        %v321 = vld [vmem:[%s1 + $0x8] sm:$0xff]
        %v322 = vld [vmem:[%s1 + $0x10] sm:$0xff]
        %v323 = vld [vmem:[%s1 + $0x18] sm:$0xff]
        %v324 = vld [vmem:[%s1 + $0x20] sm:$0xff]
        %v325 = vld [vmem:[%s1 + $0x28] sm:$0xff]
        %v326 = vld [vmem:[%s1 + $0x30] sm:$0xff]
        %v327 = vld [vmem:[%s1 + $0x38] sm:$0xff]
        %v328 = vld [vmem:[%s1 + $0x40] sm:$0xff]
        %v329 = vld [vmem:[%s1 + $0x48] sm:$0xff]
        %v330 = vld [vmem:[%s1 + $0x50] sm:$0xff]
        %v331 = vld [vmem:[%s1 + $0x58] sm:$0xff]
        %v332 = vld [vmem:[%s2] sm:$0x7]
        %v334 = vlaneseq
        %v335 = vshrl.u32 %v334, 7
        %v336 = vsub.s32 0, %v335
        %v337 = vrot.slane %v332, %v336
        %v338 = vlaneseq
        %v339 = vshrl.u32 %v338, 7
        %v340 = vsub.s32 1, %v339
        %v341 = vrot.slane %v332, %v340
        %v342 = vlaneseq
        %v343 = vshrl.u32 %v342, 7
        %v344 = vsub.s32 2, %v343
        %v345 = vrot.slane %v332, %v344
        %vm349 = vcmask 261120
        %v351 = vsel %vm349, %v319, 0
        %353 = vmatprep.subr.mxu0 %v321
        %354 = vmatpush1.msra.mxu0 %v320
        %355 = vmatprep.subr.mxu0 %v324
        %356 = vmatpush1.msra.mxu0 %v323
        %357 = vmatprep.subr.mxu0 %v327
        %358 = vmatpush1.msra.mxu0 %v326
        %359 = vmatprep.subr.mxu0 %v330
        %360 = vmatpush1.msra.mxu0 %v329
        %361 = vmatprep.subr.mxu0 0.0
        %362 = vmatpush1.msra.mxu0 0.0
        %363 = vmatprep.subr.mxu0 0.0
        %364 = vmatpush1.msra.mxu0 0.0
        %365 = vmatprep.subr.mxu0 0.0
        %366 = vmatpush1.msra.mxu0 0.0
        %367 = vmatprep.subr.mxu0 0.0
        %368 = vmatpush1.msra.mxu0 0.0
        %369 = vmatprep.subr.mxu0 0.0
        %370 = vmatpush1.msra.mxu0 0.0
        %371 = vmatprep.subr.mxu0 0.0
        %372 = vmatpush1.msra.mxu0 0.0
        %373 = vmatprep.subr.mxu0 0.0
        %374 = vmatpush1.msra.mxu0 0.0
        %375 = vmatprep.subr.mxu0 0.0
        %376 = vmatpush1.msra.mxu0 0.0
        %377 = vmatprep.subr.mxu0 0.0
        %378 = vmatpush1.msra.mxu0 0.0
        %379 = vmatprep.subr.mxu0 0.0
        %380 = vmatpush1.msra.mxu0 0.0
        %381 = vmatprep.subr.mxu0 0.0
        %382 = vmatpush1.msra.mxu0 0.0
        %383 = vmatprep.subr.mxu0 0.0
        %384 = vmatpush1.msra.mxu0 0.0
        %385 = vmatprep.subr.mxu0 0.0
        %386 = vmatpush1.msra.mxu0 0.0
        %387 = vmatprep.subr.mxu0 0.0
        %388 = vmatpush1.msra.mxu0 0.0
        %389 = vmatprep.subr.mxu0 0.0
        %390 = vmatpush1.msra.mxu0 0.0
        %391 = vmatprep.subr.mxu0 0.0
        %392 = vmatpush1.msra.mxu0 0.0
        %393 = vmatprep.subr.mxu0 0.0
        %394 = vmatpush1.msra.mxu0 0.0
        %395 = vmatprep.subr.mxu0 0.0
        %396 = vmatpush1.msra.mxu0 0.0
        %397 = vmatprep.subr.mxu0 0.0
        %398 = vmatpush1.msra.mxu0 0.0
        %399 = vmatprep.subr.mxu0 0.0
        %400 = vmatpush1.msra.mxu0 0.0
        %401 = vmatprep.subr.mxu0 0.0
        %402 = vmatpush1.msra.mxu0 0.0
        %403 = vmatprep.subr.mxu0 0.0
        %404 = vmatpush1.msra.mxu0 0.0
        %405 = vmatprep.subr.mxu0 0.0
        %406 = vmatpush1.msra.mxu0 0.0
        %407 = vmatprep.subr.mxu0 0.0
        %408 = vmatpush1.msra.mxu0 0.0
        %409 = vmatprep.subr.mxu0 0.0
        %410 = vmatpush1.msra.mxu0 0.0
        %411 = vmatprep.subr.mxu0 0.0
        %412 = vmatpush1.msra.mxu0 0.0
        %413 = vmatprep.subr.mxu0 0.0
        %414 = vmatpush1.msra.mxu0 0.0
        %415 = vmatprep.subr.mxu0 0.0
        %416 = vmatpush1.msra.mxu0 0.0
        %417 = vmatprep.mubr.f32.mxu0 0.0
        %418 = vmatmul.mubr.f32.gmra.mrb[0].mxu0 %v351
        %v419 = vpop.f32.mrb[0].mxu0
        %v420 = vadd.f32 %v337, %v419
        %v421 = vpop.f32.mrb[0].mxu0
        %v422 = vadd.f32 %v341, %v421
        %423 = vdwg.mxu0
        %424 = vmatprep.subr.mxu0 0.0
        %425 = vmatpush1.msra.mxu0 %v322
        %426 = vmatprep.subr.mxu0 0.0
        %427 = vmatpush1.msra.mxu0 %v325
        %428 = vmatprep.subr.mxu0 0.0
        %429 = vmatpush1.msra.mxu0 %v328
        %430 = vmatprep.subr.mxu0 0.0
        %431 = vmatpush1.msra.mxu0 %v331
        %432 = vmatprep.subr.mxu0 0.0
        %433 = vmatpush1.msra.mxu0 0.0
        %434 = vmatprep.subr.mxu0 0.0
        %435 = vmatpush1.msra.mxu0 0.0
        %436 = vmatprep.subr.mxu0 0.0
        %437 = vmatpush1.msra.mxu0 0.0
        %438 = vmatprep.subr.mxu0 0.0
        %439 = vmatpush1.msra.mxu0 0.0
        %440 = vmatprep.subr.mxu0 0.0
        %441 = vmatpush1.msra.mxu0 0.0
        %442 = vmatprep.subr.mxu0 0.0
        %443 = vmatpush1.msra.mxu0 0.0
        %444 = vmatprep.subr.mxu0 0.0
        %445 = vmatpush1.msra.mxu0 0.0
        %446 = vmatprep.subr.mxu0 0.0
        %447 = vmatpush1.msra.mxu0 0.0
        %448 = vmatprep.subr.mxu0 0.0
        %449 = vmatpush1.msra.mxu0 0.0
        %450 = vmatprep.subr.mxu0 0.0
        %451 = vmatpush1.msra.mxu0 0.0
        %452 = vmatprep.subr.mxu0 0.0
        %453 = vmatpush1.msra.mxu0 0.0
        %454 = vmatprep.subr.mxu0 0.0
        %455 = vmatpush1.msra.mxu0 0.0
        %456 = vmatprep.subr.mxu0 0.0
        %457 = vmatpush1.msra.mxu0 0.0
        %458 = vmatprep.subr.mxu0 0.0
        %459 = vmatpush1.msra.mxu0 0.0
        %460 = vmatprep.subr.mxu0 0.0
        %461 = vmatpush1.msra.mxu0 0.0
        %462 = vmatprep.subr.mxu0 0.0
        %463 = vmatpush1.msra.mxu0 0.0
        %464 = vmatprep.subr.mxu0 0.0
        %465 = vmatpush1.msra.mxu0 0.0
        %466 = vmatprep.subr.mxu0 0.0
        %467 = vmatpush1.msra.mxu0 0.0
        %468 = vmatprep.subr.mxu0 0.0
        %469 = vmatpush1.msra.mxu0 0.0
        %470 = vmatprep.subr.mxu0 0.0
        %471 = vmatpush1.msra.mxu0 0.0
        %472 = vmatprep.subr.mxu0 0.0
        %473 = vmatpush1.msra.mxu0 0.0
        %474 = vmatprep.subr.mxu0 0.0
        %475 = vmatpush1.msra.mxu0 0.0
        %476 = vmatprep.subr.mxu0 0.0
        %477 = vmatpush1.msra.mxu0 0.0
        %478 = vmatprep.subr.mxu0 0.0
        %479 = vmatpush1.msra.mxu0 0.0
        %480 = vmatprep.subr.mxu0 0.0
        %481 = vmatpush1.msra.mxu0 0.0
        %482 = vmatprep.subr.mxu0 0.0
        %483 = vmatpush1.msra.mxu0 0.0
        %484 = vmatprep.subr.mxu0 0.0
        %485 = vmatpush1.msra.mxu0 0.0
        %486 = vmatprep.subr.mxu0 0.0
        %487 = vmatpush1.msra.mxu0 0.0
        %488 = vmatprep.mubr.f32.mxu0 0.0
        %489 = vmatmul.mubr.f32.gmra.mrb[0].mxu0 %v351
        %v490 = vpop.f32.mrb[0].mxu0
        %v491 = vadd.f32 %v345, %v490
        %v492 = vpop.f32.mrb[0].mxu0
        %493 = vdwg.mxu0
        %v494 = vlaneseq
        %v495 = vand.u32 %v494, 127
        %v496 = vadd.s32 %v495, 128
        %v497 = vadd.s32 %v495, 256
        %vm498 = vcmp.ge.s32.totalorder %v495, 256
        %vm499 = vcmp.ge.s32.totalorder %v496, 256
        %vm500 = vcmp.ge.s32.totalorder %v497, 256
        %v501 = vmax.f32 %v420, 0.0
        %v502 = vmax.f32 %v422, 0.0
        %v503 = vmax.f32 %v491, 0.0
        %v504 = vsel %vm498, %v501, %v420
        %v505 = vsel %vm499, %v502, %v422
        %v506 = vsel %vm498, %v501, 0.0
        %v507 = vsel %vm499, %v502, 0.0
        %v508 = vsel %vm500, %v503, 0.0
        %vm509 = vcmask 1041408
        %v510 = vsel %vm509, %v506, 0.0
        %v511 = vsel %vm509, %v507, 0.0
        %v512 = vadd.f32 %v510, %v511
        %v513 = vsel %vm509, %v508, 0.0
        %v514 = vadd.f32 %v512, %v513
        %515 = vadd.xlane.f32.xlu0 %v514
        %v516 = vpop.xlane.xlu0 %515
        %v517 = vld [vmem:[%s293] sm:$0x3]
        %vm518 = vcmp.gt.f32.partialorder %v517, 0.5
        %v519 = vsel %vm518, 1, 0
        %520 = vset.pattern.permute.xlu0 0
        %521 = vperm.xlu0 %520, %v519
        %v522 = vpop.permute.xlu0 %521
        %vm523 = vcmp.eq.s32.totalorder %v522, 1
        %v524 = vsel %vm523, 0.0, %v504
        %vm525 = vcmask 254976
        %526 = vst.msk [vmem:[%s297] sm:$0x3] %vm525, %v524
        %v527 = vsel %vm523, 0.0, %v505
        %528 = vst.msk [vmem:[%s301] sm:$0x3] %vm525, %v527
        %v529 = vsel %vm518, 0.0, %v516
        %vm530 = vcmask 1024
        %531 = vst.msk [vmem:[%s305] sm:$0x3] %vm530, %v529
      $region44: #{nvib_forward.2} parent=35 // pred_fallthru
        _
      %p532 = scmp.lt.s32.totalorder %s18, 8
      %s533 = scalar_select %p532, %s18, 8
      %s534 = smul.addr %s533, 2
      %s535 = scalar_lea.vmem %s4, %s534
      %p536 = scmp.lt.s32.totalorder %s18, 8
      %s537 = scalar_select %p536, %s18, 8
      %s538 = smul.addr %s537, 2
      %s539 = scalar_lea.vmem %s5, %s538
      %p540 = scmp.lt.s32.totalorder %s18, 8
      %s541 = scalar_select %p540, %s18, 8
      %s542 = smul.addr %s541, 2
      %s543 = scalar_lea.vmem %s6, %s542
      // Predicated region
      $region45: #{nvib_forward.2} parent=35 // pred_check
        %p544 = pneg %p136
      $region46: #{nvib_forward.2} parent=35 // pred_check_branch
        %546 = sbr.rel (%p544) target = $region48
      $region47: #{nvib_forward.2} parent=35 // pred_region
        _
      $region48: #{nvib_forward.2} parent=35 // pred_fallthru
        _
      // Predicated region
      $region49: #{nvib_forward.2} parent=35 // pred_check
        %p547 = pneg %p162
      $region50: #{nvib_forward.2} parent=35 // pred_check_branch
        %549 = sbr.rel (%p547) target = $region52
      $region51: #{nvib_forward.2} parent=35 // pred_region
        _
      $region52: #{nvib_forward.2} parent=35 // pred_fallthru
        _
      // Predicated region
      $region53: #{nvib_forward.2} parent=35 // pred_check
        %p550 = pneg %p188
      $region54: #{nvib_forward.2} parent=35 // pred_check_branch
        %552 = sbr.rel (%p550) target = $region56
      $region55: #{nvib_forward.2} parent=35 // pred_region
        _
      $region56: #{nvib_forward.2} parent=35 // pred_fallthru
        _
    $region36: #{nvib_forward.2} parent=5 // pred_fallthru
      _
    %p553 = scmp.le.s32.totalorder 2, %s13
    // Predicated region
    $region57: #{nvib_forward.2} parent=5 // pred_check
      %p554 = pneg %p553
    $region58: #{nvib_forward.2} parent=5 // pred_check_branch
      %556 = sbr.rel (%p554) target = $region60
    $region59: #{nvib_forward.2} parent=5 // pred_region
      %s557 = ssub.s32 %s13, 2
      // Predicated region
      $region61: #{nvib_forward.2} parent=59 // pred_check
        %p558 = pneg %p142
      $region62: #{nvib_forward.2} parent=59 // pred_check_branch
        %560 = sbr.rel (%p558) target = $region64
      $region63: #{nvib_forward.2} parent=59 // pred_region
        %p561 = scmp.lt.s32.totalorder %s19, 8
        %s562 = scalar_select %p561, %s19, 8
        %s563 = smul.addr %s562, 2
        %s564 = scalar_lea.vmem %s4, %s563
      $region64: #{nvib_forward.2} parent=59 // pred_fallthru
        _
      // Predicated region
      $region65: #{nvib_forward.2} parent=59 // pred_check
        %p565 = pneg %p168
      $region66: #{nvib_forward.2} parent=59 // pred_check_branch
        %567 = sbr.rel (%p565) target = $region68
      $region67: #{nvib_forward.2} parent=59 // pred_region
        %p568 = scmp.lt.s32.totalorder %s19, 8
        %s569 = scalar_select %p568, %s19, 8
        %s570 = smul.addr %s569, 2
        %s571 = scalar_lea.vmem %s5, %s570
      $region68: #{nvib_forward.2} parent=59 // pred_fallthru
        _
      // Predicated region
      $region69: #{nvib_forward.2} parent=59 // pred_check
        %p572 = pneg %p194
      $region70: #{nvib_forward.2} parent=59 // pred_check_branch
        %574 = sbr.rel (%p572) target = $region72
      $region71: #{nvib_forward.2} parent=59 // pred_region
        %p575 = scmp.lt.s32.totalorder %s19, 8
        %s576 = scalar_select %p575, %s19, 8
        %s577 = smul.addr %s576, 2
        %s578 = scalar_lea.vmem %s6, %s577
      $region72: #{nvib_forward.2} parent=59 // pred_fallthru
        _
    $region60: #{nvib_forward.2} parent=5 // pred_fallthru
      _
  $region6: #{nvib_forward.2} parent=0 // loop_footer
    %s17 = sadd.s32 1, %s13
  $region7: #{nvib_forward.2} parent=0 // loop_footer_branch
    %12 = sbr.rel target = $region3
  $region8: #{nvib_forward.2} parent=0 // loop_exit
    _

</llo_original>
